<compile_context>
chip_gen: v6e
topology: v6e:2x2x1
jax: 0.10.0
libtpu: 0.0.40
codegen_flags: <defaults>
</compile_context>

<pallas_src>
import functools
import math

import jax
import jax.numpy as jnp
from jax.experimental import pallas as pl
from jax.experimental.pallas import tpu as pltpu


LANE = 128               # lane width: pad hidden/output feature dims to this
_VPU_LAYER1_MAX_K = 16   # unroll layer 1 on the VPU when n_feature is this small


def _round_up(n, m):
    return ((n + m - 1) // m) * m


def _pad_width(n):
    # Lane-dense padding. If the logical width ever grows past 128, pad to 256 so
    # a single push fills the 2x256^2 MXU on v6e/v7x.
    return _round_up(n, LANE) if n <= LANE else _round_up(n, 2 * LANE)


def _pick_batch_tile(batch):
    # 64-row tiles -> grid >= 2 even at B=100 (both v7x TCs get work); at training
    # scale use 512-row tiles to amortize the ~0.35 us per-grid-step overhead.
    return 512 if batch >= 1024 else 64


def _mlp_kernel(x_ref, w1_ref, b1_ref, w2_ref, b2_ref, o_ref, *, layer1_on_vpu):
    x = x_ref[...]      # (TB, F)      float32
    w1 = w1_ref[...]    # (F, H_pad)   float32

    if layer1_on_vpu:
        # K is tiny (e.g. 2): unrolled f32 broadcast multiply-adds on the VPU.
        # Avoids wasting a whole MXU push on a K=2 matmul and keeps layer 1 f32.
        h = x[:, 0:1] * w1[0:1, :]
        for k in range(1, x.shape[1]):          # static unroll (trace time)
            h = h + x[:, k:k + 1] * w1[k:k + 1, :]
    else:
        # Fallback for large n_feature: bf16 MXU matmul with f32 accumulation.
        h = jnp.dot(x.astype(jnp.bfloat16), w1.astype(jnp.bfloat16),
                    preferred_element_type=jnp.float32)

    # bias + ReLU stay in f32 (v5e VPU has no bf16 VALU anyway).
    h = jnp.maximum(h + b1_ref[...], 0.0)       # b1 is (1, H_pad) -> broadcasts

    # Layer 2: bf16 MXU operands, f32 accumulation, f32 bias add.
    y = jnp.dot(h.astype(w2_ref.dtype), w2_ref[...],
                preferred_element_type=jnp.float32)
    o_ref[...] = (y + b2_ref[...]).astype(o_ref.dtype)


def prepare_params(w1_t, b1, w2_t, b2):
    """One-time parameter prep: zero-pad to lane-dense widths and cast the
    second-layer weight to bf16. Run once (e.g. only after weight updates),
    NOT per forward call."""
    n_feature, n_hidden = w1_t.shape
    n_output = w2_t.shape[1]
    h_pad = _pad_width(n_hidden)
    o_pad = _pad_width(n_output)

    # Layer-1 weight stays f32 (consumed by the VPU path); layer-2 weight is the
    # only bf16 MXU operand. Biases stay f32 and are added on the f32 accumulator.
    w1_p = jnp.zeros((n_feature, h_pad), jnp.float32).at[:, :n_hidden].set(
        w1_t.astype(jnp.float32))
    b1_p = jnp.zeros((1, h_pad), jnp.float32).at[:, :n_hidden].set(
        b1.astype(jnp.float32).reshape(1, n_hidden))
    w2_p = jnp.zeros((h_pad, o_pad), jnp.bfloat16).at[:n_hidden, :n_output].set(
        w2_t.astype(jnp.bfloat16))
    b2_p = jnp.zeros((1, o_pad), jnp.float32).at[:, :n_output].set(
        b2.astype(jnp.float32).reshape(1, n_output))
    return w1_p, b1_p, w2_p, b2_p


def _forward_padded(x, w1_p, b1_p, w2_p, b2_p, tb):
    """Pads only x, launches the pallas kernel, returns the padded (B_pad, O_pad)
    slab (consume it directly downstream to skip the un-pad copy)."""
    batch, n_feature = x.shape
    h_pad = w1_p.shape[1]
    o_pad = w2_p.shape[1]
    b_pad = _round_up(batch, tb)

    x_p = x.astype(jnp.float32)
    if b_pad != batch:
        x_p = jnp.zeros((b_pad, n_feature), jnp.float32).at[:batch, :].set(x_p)

    kernel = functools.partial(
        _mlp_kernel, layer1_on_vpu=(n_feature <= _VPU_LAYER1_MAX_K))

    return pl.pallas_call(
        kernel,
        out_shape=jax.ShapeDtypeStruct((b_pad, o_pad), jnp.float32),
        grid=(b_pad // tb,),
        in_specs=[
            # batch-tiled input (double-buffered across grid steps)
            pl.BlockSpec((tb, n_feature), lambda i: (i, 0)),
            # weights & biases: same block every step -> stay resident in VMEM
            pl.BlockSpec((n_feature, h_pad), lambda i: (0, 0)),
            pl.BlockSpec((1, h_pad), lambda i: (0, 0)),
            pl.BlockSpec((h_pad, o_pad), lambda i: (0, 0)),
            pl.BlockSpec((1, o_pad), lambda i: (0, 0)),
        ],
        out_specs=pl.BlockSpec((tb, o_pad), lambda i: (i, 0)),
        compiler_params=pltpu.CompilerParams(
            # batch tiles are independent -> shard across TensorCores (v7x)
            dimension_semantics=("parallel",),
        ),
    )(x_p, w1_p, b1_p, w2_p, b2_p)


@functools.partial(jax.jit, static_argnames=("n_output",))
def net_forward(x, w1_p, b1_p, w2_p, b2_p, *, n_output):
    """x: [B, n_feature]; pre-prepared padded params -> [B, n_output] float32."""
    tb = _pick_batch_tile(x.shape[0])
    out_padded = _forward_padded(x, w1_p, b1_p, w2_p, b2_p, tb)
    # The un-pad slice is a wrapper-side copy; callers that can consume the padded
    # slab should use _forward_padded directly.
    return out_padded[:x.shape[0], :n_output]


def init_linear_params(key, in_features, out_features):
    """Deterministic init mimicking torch.nn.Linear default (uniform +-1/sqrt(in))."""
    kw, kb = jax.random.split(key)
    bound = 1.0 / math.sqrt(in_features)
    # PyTorch weight is [out, in]; we store the transpose [in, out] for the kernel.
    w_t = jax.random.uniform(
        kw, (in_features, out_features), jnp.float32, -bound, bound)
    b = jax.random.uniform(kb, (out_features,), jnp.float32, -bound, bound)
    return w_t, b


if __name__ == "__main__":
    # Shapes implied by the module/script: n_feature=2 (2-D points), small hidden,
    # 2 output classes; batch = 2 * data_size = 100 as in the reference script.
    n_feature, n_hidden, n_output = 2, 32, 2
    batch = 100

    key = jax.random.PRNGKey(0)
    kx1, kx2, k1, k2 = jax.random.split(key, 4)

    # Synthetic input analogous to the torch.normal(+-2, 1) 2-D point clouds
    # (distinct keys for the two clouds).
    x_pos = jax.random.normal(kx1, (batch // 2, n_feature), jnp.float32) + 2.0
    x_neg = jax.random.normal(kx2, (batch - batch // 2, n_feature), jnp.float32) - 2.0
    x = jnp.concatenate([x_pos, x_neg], axis=0)

    w1_t, b1 = init_linear_params(k1, n_feature, n_hidden)
    w2_t, b2 = init_linear_params(k2, n_hidden, n_output)

    # One-time parameter prep, hoisted out of the forward path.
    params = prepare_params(w1_t, b1, w2_t, b2)
    params = jax.tree_util.tree_map(jax.block_until_ready, params)

    out = net_forward(x, *params, n_output=n_output)
    out = jax.block_until_ready(out)

    # Cross-check against a plain-JAX f32 reference of the same forward pass.
    # Layer 1 is exact f32; only layer 2 uses bf16 MXU operands -> loose tolerance.
    ref = jnp.maximum(x @ w1_t + b1, 0.0) @ w2_t + b2
    assert out.shape == (batch, n_output)
    assert jnp.allclose(out, ref, atol=2e-2, rtol=2e-2), (
        float(jnp.max(jnp.abs(out - ref))))

    print("KERNEL_OK")
</pallas_src>

<mosaic_0001>
module attributes {stable_mosaic.version = 11 : i64} {
  func.func @_mlp_kernel(%arg0: i32, %arg1: memref<64x2xf32, #tpu.memory_space<vmem>>, %arg2: memref<2x128xf32, #tpu.memory_space<vmem>>, %arg3: memref<1x128xf32, #tpu.memory_space<vmem>>, %arg4: memref<128x128xbf16, #tpu.memory_space<vmem>>, %arg5: memref<1x128xf32, #tpu.memory_space<vmem>>, %arg6: memref<64x128xf32, #tpu.memory_space<vmem>>) attributes {dimension_semantics = [#tpu.dimension_semantics<parallel>], iteration_bounds = array<i64: 2>, scalar_prefetch = 0 : i64, scratch_operands = 0 : i64, tpu.core_type = #tpu.core_type<tc>, window_params = [{transform_indices = @transform_0, window_bounds = array<i64: 64, 2>}, {pipeline_mode = #tpu.pipeline_mode<synchronous>, transform_indices = @transform_1, window_bounds = array<i64: 2, 128>}, {pipeline_mode = #tpu.pipeline_mode<synchronous>, transform_indices = @transform_2, window_bounds = array<i64: 1, 128>}, {pipeline_mode = #tpu.pipeline_mode<synchronous>, transform_indices = @transform_3, window_bounds = array<i64: 128, 128>}, {pipeline_mode = #tpu.pipeline_mode<synchronous>, transform_indices = @transform_4, window_bounds = array<i64: 1, 128>}, {transform_indices = @transform_5, window_bounds = array<i64: 64, 128>}]} {
    %c0 = arith.constant 0 : index
    %c0_0 = arith.constant 0 : index
    %0 = vector.load %arg1[%c0, %c0_0] : memref<64x2xf32, #tpu.memory_space<vmem>>, vector<64x2xf32>
    %c0_1 = arith.constant 0 : index
    %c0_2 = arith.constant 0 : index
    %1 = vector.load %arg2[%c0_1, %c0_2] : memref<2x128xf32, #tpu.memory_space<vmem>>, vector<2x128xf32>
    %2 = vector.extract_strided_slice %0 {offsets = [0, 0], sizes = [64, 1], strides = [1, 1]} : vector<64x2xf32> to vector<64x1xf32>
    %3 = vector.extract_strided_slice %1 {offsets = [0, 0], sizes = [1, 128], strides = [1, 1]} : vector<2x128xf32> to vector<1x128xf32>
    %4 = vector.broadcast %2 : vector<64x1xf32> to vector<64x128xf32>
    %5 = vector.broadcast %3 : vector<1x128xf32> to vector<64x128xf32>
    %6 = arith.mulf %4, %5 : vector<64x128xf32>
    %7 = vector.extract_strided_slice %0 {offsets = [0, 1], sizes = [64, 1], strides = [1, 1]} : vector<64x2xf32> to vector<64x1xf32>
    %8 = vector.extract_strided_slice %1 {offsets = [1, 0], sizes = [1, 128], strides = [1, 1]} : vector<2x128xf32> to vector<1x128xf32>
    %9 = vector.broadcast %7 : vector<64x1xf32> to vector<64x128xf32>
    %10 = vector.broadcast %8 : vector<1x128xf32> to vector<64x128xf32>
    %11 = arith.mulf %9, %10 : vector<64x128xf32>
    %12 = arith.addf %6, %11 : vector<64x128xf32>
    %c0_3 = arith.constant 0 : index
    %c0_4 = arith.constant 0 : index
    %13 = vector.load %arg3[%c0_3, %c0_4] : memref<1x128xf32, #tpu.memory_space<vmem>>, vector<1x128xf32>
    %14 = vector.broadcast %13 : vector<1x128xf32> to vector<64x128xf32>
    %15 = arith.addf %12, %14 : vector<64x128xf32>
    %cst = arith.constant 0.000000e+00 : f32
    %16 = vector.broadcast %cst : f32 to vector<64x128xf32>
    %17 = arith.maximumf %15, %16 : vector<64x128xf32>
    %18 = arith.truncf %17 : vector<64x128xf32> to vector<64x128xbf16>
    %c0_5 = arith.constant 0 : index
    %c0_6 = arith.constant 0 : index
    %19 = vector.load %arg4[%c0_5, %c0_6] : memref<128x128xbf16, #tpu.memory_space<vmem>>, vector<128x128xbf16>
    %cst_7 = arith.constant dense<0.000000e+00> : vector<64x128xf32>
    %20 = tpu.matmul %18, %19, %cst_7 {dimension_numbers = #tpu.dot_dimension_numbers<[1], [0], [0], [1], [0, 0, 1, 1], [], []>} : vector<64x128xbf16>, vector<128x128xbf16>, vector<64x128xf32> -> vector<64x128xf32>
    %c0_8 = arith.constant 0 : index
    %c0_9 = arith.constant 0 : index
    %21 = vector.load %arg5[%c0_8, %c0_9] : memref<1x128xf32, #tpu.memory_space<vmem>>, vector<1x128xf32>
    %22 = vector.broadcast %21 : vector<1x128xf32> to vector<64x128xf32>
    %23 = arith.addf %20, %22 : vector<64x128xf32>
    %c0_10 = arith.constant 0 : index
    %c0_11 = arith.constant 0 : index
    %24 = vector.load %arg6[%c0_10, %c0_11] : memref<64x128xf32, #tpu.memory_space<vmem>>, vector<64x128xf32>
    tpu.vector_store %arg6[%c0_10, %c0_11], %23 {strides = array<i32>} : memref<64x128xf32, #tpu.memory_space<vmem>>, vector<64x128xf32>,
    return
  }
  func.func @transform_0(%arg0: i32) -> (i32, i32) {
    %c0_i32 = arith.constant 0 : i32
    %c0_i32_0 = arith.constant 0 : i32
    return %arg0, %c0_i32 : i32, i32
  }
  func.func @transform_1(%arg0: i32) -> (i32, i32) {
    %c0_i32 = arith.constant 0 : i32
    %c0_i32_0 = arith.constant 0 : i32
    %c0_i32_1 = arith.constant 0 : i32
    return %c0_i32, %c0_i32_0 : i32, i32
  }
  func.func @transform_2(%arg0: i32) -> (i32, i32) {
    %c0_i32 = arith.constant 0 : i32
    %c0_i32_0 = arith.constant 0 : i32
    %c0_i32_1 = arith.constant 0 : i32
    return %c0_i32, %c0_i32_0 : i32, i32
  }
  func.func @transform_3(%arg0: i32) -> (i32, i32) {
    %c0_i32 = arith.constant 0 : i32
    %c0_i32_0 = arith.constant 0 : i32
    %c0_i32_1 = arith.constant 0 : i32
    return %c0_i32, %c0_i32_0 : i32, i32
  }
  func.func @transform_4(%arg0: i32) -> (i32, i32) {
    %c0_i32 = arith.constant 0 : i32
    %c0_i32_0 = arith.constant 0 : i32
    %c0_i32_1 = arith.constant 0 : i32
    return %c0_i32, %c0_i32_0 : i32, i32
  }
  func.func @transform_5(%arg0: i32) -> (i32, i32) {
    %c0_i32 = arith.constant 0 : i32
    %c0_i32_0 = arith.constant 0 : i32
    return %arg0, %c0_i32 : i32, i32
  }
}

</mosaic_0001>

<llo_original>
// kernel: net_forward.1
$region0: #{net_forward.1}
  #allocation0 [shape = 'u32[]', space=smem, size = 0x4, offset = 0x4, fixed_abs, tag = 'smem constant byte address 0x4 - core index']
  #allocation1 [shape = 'u32[144,128]{1,0:T(1,128)}', space=vmem, size = 0x12000, scoped, tag = 'internal scratch']
  %s0 = inlined_call_operand.vmem [shape: f32[128,2], index: 0, kind: input, shape index: {}]
  %s1 = inlined_call_operand.vmem [shape: f32[2,128], index: 1, kind: input, shape index: {}]
  %s2 = inlined_call_operand.vmem [shape: f32[1,128], index: 2, kind: input, shape index: {}]
  %s3 = inlined_call_operand.vmem [shape: bf16[128,128], index: 3, kind: input, shape index: {}]
  %s4 = inlined_call_operand.vmem [shape: f32[1,128], index: 4, kind: input, shape index: {}]
  %s5 = inlined_call_operand.vmem [shape: f32[128,128], index: 5, kind: output, shape index: {}]
  %s6 = sld [smem:[#allocation0]]
  $region53: #{net_forward.1} parent=0
    _
  %s8 = ssub.s32 1, %s6
  %s9 = scalar_select 0, %s8, %s6
  loop: start=0, step=1, limit=4
  $region2: #{net_forward.1} parent=0 // loop_pre_header
    _
  $region3: #{net_forward.1} parent=0 // loop_header
    %s11 = sphi 0, %s15
    %p12 = scmp.ge.s32.totalorder %s11, 4
    %s21 = sphi 0, %s23
    %s24 = sphi 0, %s21
    %s25 = sphi 0, %s24
    %s41 = sphi 0, %s25
    %s45 = sphi 0, %s45
    %s47 = sphi 0, %s45
    %s48 = sphi 0, %s47
    %s62 = sphi 0, %s48
    %s66 = sphi 0, %s66
    %s68 = sphi 0, %s66
    %s69 = sphi 0, %s68
    %s83 = sphi 0, %s69
    %s87 = sphi 0, %s87
    %s89 = sphi 0, %s87
    %s90 = sphi 0, %s89
    %s104 = sphi 0, %s90
    %s108 = sphi 0, %s108
    %s110 = sphi 0, %s108
    %s111 = sphi 0, %s110
    %s125 = sphi 0, %s111
    %s131 = sphi 0, %s133
    %s134 = sphi 0, %s131
    %s135 = sphi 0, %s134
    %s151 = sphi 0, %s135
  $region4: #{net_forward.1} parent=0 // loop_header_branch
    %14 = sbr.rel (%p12) target = $region8
  $region5: #{net_forward.1} parent=0 // loop_body
    %s16 = ssub.s32 %s11, 1
    %s17 = ssub.s32 %s11, 2
    %s18 = sadd.s32 %s11, 1
    %s19 = ssub.s32 %s11, %s18
    %p20 = scmp.eq.s32.totalorder %s19, 0
    %s22 = sadd.s32 %s21, 1
    %s23 = scalar_select %p20, %s21, %s22
    %p26 = pneg %p20
    %p27 = scmp.eq.s32.totalorder %s11, 1
    %p28 = por %p26, %p27
    %p29 = scmp.ne.s32.totalorder %s21, %s24
    %p30 = scmp.eq.s32.totalorder %s11, 0
    %p31 = por %p29, %p30
    %p32 = scmp.ne.s32.totalorder %s21, %s24
    %p33 = scmp.eq.s32.totalorder %s16, 1
    %p34 = por %p32, %p33
    %p35 = scmp.ne.s32.totalorder %s24, %s25
    %p36 = scmp.eq.s32.totalorder %s16, 0
    %p37 = por %p35, %p36
    %p38 = scmp.ne.s32.totalorder %s24, %s25
    %p39 = scmp.eq.s32.totalorder %s17, 1
    %p40 = por %p38, %p39
    %p42 = scmp.ne.s32.totalorder %s25, %s41
    %p43 = scmp.eq.s32.totalorder %s17, 0
    %p44 = por %p42, %p43
    %s46 = sadd.s32 %s45, 1
    %p49 = scmp.eq.s32.totalorder %s11, 1
    %p50 = scmp.ne.s32.totalorder %s45, %s47
    %p51 = scmp.eq.s32.totalorder %s11, 0
    %p52 = por %p50, %p51
    %p53 = scmp.ne.s32.totalorder %s45, %s47
    %p54 = scmp.eq.s32.totalorder %s16, 1
    %p55 = por %p53, %p54
    %p56 = scmp.ne.s32.totalorder %s47, %s48
    %p57 = scmp.eq.s32.totalorder %s16, 0
    %p58 = por %p56, %p57
    %p59 = scmp.ne.s32.totalorder %s47, %s48
    %p60 = scmp.eq.s32.totalorder %s17, 1
    %p61 = por %p59, %p60
    %p63 = scmp.ne.s32.totalorder %s48, %s62
    %p64 = scmp.eq.s32.totalorder %s17, 0
    %p65 = por %p63, %p64
    %s67 = sadd.s32 %s66, 1
    %p70 = scmp.eq.s32.totalorder %s11, 1
    %p71 = scmp.ne.s32.totalorder %s66, %s68
    %p72 = scmp.eq.s32.totalorder %s11, 0
    %p73 = por %p71, %p72
    %p74 = scmp.ne.s32.totalorder %s66, %s68
    %p75 = scmp.eq.s32.totalorder %s16, 1
    %p76 = por %p74, %p75
    %p77 = scmp.ne.s32.totalorder %s68, %s69
    %p78 = scmp.eq.s32.totalorder %s16, 0
    %p79 = por %p77, %p78
    %p80 = scmp.ne.s32.totalorder %s68, %s69
    %p81 = scmp.eq.s32.totalorder %s17, 1
    %p82 = por %p80, %p81
    %p84 = scmp.ne.s32.totalorder %s69, %s83
    %p85 = scmp.eq.s32.totalorder %s17, 0
    %p86 = por %p84, %p85
    %s88 = sadd.s32 %s87, 1
    %p91 = scmp.eq.s32.totalorder %s11, 1
    %p92 = scmp.ne.s32.totalorder %s87, %s89
    %p93 = scmp.eq.s32.totalorder %s11, 0
    %p94 = por %p92, %p93
    %p95 = scmp.ne.s32.totalorder %s87, %s89
    %p96 = scmp.eq.s32.totalorder %s16, 1
    %p97 = por %p95, %p96
    %p98 = scmp.ne.s32.totalorder %s89, %s90
    %p99 = scmp.eq.s32.totalorder %s16, 0
    %p100 = por %p98, %p99
    %p101 = scmp.ne.s32.totalorder %s89, %s90
    %p102 = scmp.eq.s32.totalorder %s17, 1
    %p103 = por %p101, %p102
    %p105 = scmp.ne.s32.totalorder %s90, %s104
    %p106 = scmp.eq.s32.totalorder %s17, 0
    %p107 = por %p105, %p106
    %s109 = sadd.s32 %s108, 1
    %p112 = scmp.eq.s32.totalorder %s11, 1
    %p113 = scmp.ne.s32.totalorder %s108, %s110
    %p114 = scmp.eq.s32.totalorder %s11, 0
    %p115 = por %p113, %p114
    %p116 = scmp.ne.s32.totalorder %s108, %s110
    %p117 = scmp.eq.s32.totalorder %s16, 1
    %p118 = por %p116, %p117
    %p119 = scmp.ne.s32.totalorder %s110, %s111
    %p120 = scmp.eq.s32.totalorder %s16, 0
    %p121 = por %p119, %p120
    %p122 = scmp.ne.s32.totalorder %s110, %s111
    %p123 = scmp.eq.s32.totalorder %s17, 1
    %p124 = por %p122, %p123
    %p126 = scmp.ne.s32.totalorder %s111, %s125
    %p127 = scmp.eq.s32.totalorder %s17, 0
    %p128 = por %p126, %p127
    %s129 = ssub.s32 %s11, %s18
    %p130 = scmp.eq.s32.totalorder %s129, 0
    %s132 = sadd.s32 %s131, 1
    %s133 = scalar_select %p130, %s131, %s132
    %p136 = pneg %p130
    %p137 = scmp.eq.s32.totalorder %s11, 1
    %p138 = por %p136, %p137
    %p139 = scmp.ne.s32.totalorder %s131, %s134
    %p140 = scmp.eq.s32.totalorder %s11, 0
    %p141 = por %p139, %p140
    %p142 = scmp.ne.s32.totalorder %s131, %s134
    %p143 = scmp.eq.s32.totalorder %s16, 1
    %p144 = por %p142, %p143
    %p145 = scmp.ne.s32.totalorder %s134, %s135
    %p146 = scmp.eq.s32.totalorder %s16, 0
    %p147 = por %p145, %p146
    %p148 = scmp.ne.s32.totalorder %s134, %s135
    %p149 = scmp.eq.s32.totalorder %s17, 1
    %p150 = por %p148, %p149
    %p152 = scmp.ne.s32.totalorder %s135, %s151
    %p153 = scmp.eq.s32.totalorder %s17, 0
    %p154 = por %p152, %p153
    %p155 = scmp.le.s32.totalorder 1, %s11
    %p156 = scmp.lt.s32.totalorder %s11, 3
    %p157 = pnand %p155, %p156
    %p158 = pneg %p157
    // Predicated region
    $region9: #{net_forward.1} parent=5 // pred_check
      _
    $region10: #{net_forward.1} parent=5 // pred_check_branch
      %160 = sbr.rel (%p157) target = $region12
    $region11: #{net_forward.1} parent=5 // pred_region
      %s161 = ssub.s32 %s11, 1
      // Predicated region
      $region13: #{net_forward.1} parent=11 // pred_check
        %p162 = pneg %p58
      $region14: #{net_forward.1} parent=11 // pred_check_branch
        %164 = sbr.rel (%p162) target = $region16
      $region15: #{net_forward.1} parent=11 // pred_region
        _
      $region16: #{net_forward.1} parent=11 // pred_fallthru
        _
      // Predicated region
      $region17: #{net_forward.1} parent=11 // pred_check
        %p165 = pneg %p79
      $region18: #{net_forward.1} parent=11 // pred_check_branch
        %167 = sbr.rel (%p165) target = $region20
      $region19: #{net_forward.1} parent=11 // pred_region
        _
      $region20: #{net_forward.1} parent=11 // pred_fallthru
        _
      // Predicated region
      $region21: #{net_forward.1} parent=11 // pred_check
        %p168 = pneg %p100
      $region22: #{net_forward.1} parent=11 // pred_check_branch
        %170 = sbr.rel (%p168) target = $region24
      $region23: #{net_forward.1} parent=11 // pred_region
        _
      $region24: #{net_forward.1} parent=11 // pred_fallthru
        _
      // Predicated region
      $region25: #{net_forward.1} parent=11 // pred_check
        %p171 = pneg %p121
      $region26: #{net_forward.1} parent=11 // pred_check_branch
        %173 = sbr.rel (%p171) target = $region28
      $region27: #{net_forward.1} parent=11 // pred_region
        _
      $region28: #{net_forward.1} parent=11 // pred_fallthru
        _
    $region12: #{net_forward.1} parent=5 // pred_fallthru
      _
    %p174 = scmp.lt.s32.totalorder %s11, 2
    // Predicated region
    $region29: #{net_forward.1} parent=5 // pred_check
      %p175 = pneg %p174
    $region30: #{net_forward.1} parent=5 // pred_check_branch
      %177 = sbr.rel (%p175) target = $region32
    $region31: #{net_forward.1} parent=5 // pred_region
      // Predicated region
      $region33: #{net_forward.1} parent=31 // pred_check
        %p178 = pneg %p31
      $region34: #{net_forward.1} parent=31 // pred_check_branch
        %180 = sbr.rel (%p178) target = $region36
      $region35: #{net_forward.1} parent=31 // pred_region
        %s181 = smul.u32 8, %s11
        %p182 = scmp.lt.s32.totalorder %s181, 15
        %s183 = scalar_select %p182, %s181, 15
        %s184 = smul.addr %s183, 8
        %s185 = scalar_lea.vmem %s0, %s184
        %s186 = smul.u32 8, %s11
      $region36: #{net_forward.1} parent=31 // pred_fallthru
        _
    $region32: #{net_forward.1} parent=5 // pred_fallthru
      _
    %p187 = scmp.le.s32.totalorder 1, %s11
    %p188 = scmp.lt.s32.totalorder %s11, 3
    %p189 = pnand %p187, %p188
    %p190 = pneg %p189
    // Predicated region
    $region37: #{net_forward.1} parent=5 // pred_check
      _
    $region38: #{net_forward.1} parent=5 // pred_check_branch
      %192 = sbr.rel (%p189) target = $region40
    $region39: #{net_forward.1} parent=5 // pred_region
      %s193 = ssub.s32 %s11, 1
      %s194 = smul.u32 8, %s16
      %p195 = scmp.lt.s32.totalorder %s194, 15
      %s196 = scalar_select %p195, %s194, 15
      %s197 = smul.addr %s196, 8
      %s198 = scalar_lea.vmem %s0, %s197
      %p199 = pneg %p37
      %p200 = pneg %p34
      %p201 = pneg %p58
      %p202 = pneg %p55
      %p203 = pneg %p79
      %p204 = pneg %p76
      %p205 = pneg %p100
      %p206 = pneg %p97
      %p207 = pneg %p121
      %p208 = pneg %p118
      %p209 = pneg %p147
      %p210 = pneg %p144
      %s211 = smul.u32 8, %s16
      %p212 = scmp.lt.s32.totalorder %s211, 15
      %s213 = scalar_select %p212, %s211, 15
      %s214 = smul.addr %s213, 8
      %s215 = scalar_lea.vmem %s5, %s214
      %s216 = smul.u32 8, %s16
      %p217 = scmp.lt.s32.totalorder %s216, 15
      %s218 = scalar_select %p217, %s216, 15
      %s219 = smul.addr %s218, 8
      %s220 = scalar_lea.vmem %s0, %s219
      %s221 = smul.u32 8, %s16
      %s222 = smul.u32 8, %s16
      %p223 = scmp.lt.s32.totalorder %s222, 15
      %s224 = scalar_select %p223, %s222, 15
      %s225 = smul.addr %s224, 8
      %s226 = scalar_lea.vmem %s5, %s225
      %s227 = smul.u32 8, %s16
      %v229 = vld [vmem:[%s220] sm:$0xff]
      %v230 = vld [vmem:[%s220 + $0x8] sm:$0xff]
      %v231 = vld [vmem:[%s220 + $0x10] sm:$0xff]
      %v232 = vld [vmem:[%s220 + $0x18] sm:$0xff]
      %v233 = vld [vmem:[%s220 + $0x20] sm:$0xff]
      %v234 = vld [vmem:[%s220 + $0x28] sm:$0xff]
      %v235 = vld [vmem:[%s220 + $0x30] sm:$0xff]
      %v236 = vld [vmem:[%s220 + $0x38] sm:$0xff]
      %v237 = vld [vmem:[%s1] sm:$0x3]
      %239 = vset.pattern.permute.xlu0 0
      %240 = vperm.xlu0 %239, %v229
      %v241 = vpop.permute.xlu0 %240
      %244 = vset.pattern.permute.xlu0 0
      %245 = vperm.xlu0 %244, %v230
      %v246 = vpop.permute.xlu0 %245
      %249 = vset.pattern.permute.xlu0 0
      %250 = vperm.xlu0 %249, %v231
      %v251 = vpop.permute.xlu0 %250
      %254 = vset.pattern.permute.xlu0 0
      %255 = vperm.xlu0 %254, %v232
      %v256 = vpop.permute.xlu0 %255
      %259 = vset.pattern.permute.xlu0 0
      %260 = vperm.xlu0 %259, %v233
      %v261 = vpop.permute.xlu0 %260
      %264 = vset.pattern.permute.xlu0 0
      %265 = vperm.xlu0 %264, %v234
      %v266 = vpop.permute.xlu0 %265
      %269 = vset.pattern.permute.xlu0 0
      %270 = vperm.xlu0 %269, %v235
      %v271 = vpop.permute.xlu0 %270
      %274 = vset.pattern.permute.xlu0 0
      %275 = vperm.xlu0 %274, %v236
      %v276 = vpop.permute.xlu0 %275
      %v278 = vlaneseq
      %v279 = vshrl.u32 %v278, 7
      %v280 = vsub.s32 0, %v279
      %v281 = vrot.slane %v237, %v280
      %v282 = vmul.f32 %v241, %v281
      %v283 = vmul.f32 %v246, %v281
      %v284 = vmul.f32 %v251, %v281
      %v285 = vmul.f32 %v256, %v281
      %v286 = vmul.f32 %v261, %v281
      %v287 = vmul.f32 %v266, %v281
      %v288 = vmul.f32 %v271, %v281
      %v289 = vmul.f32 %v276, %v281
      %290 = vset.pattern.permute.xlu0 1
      %291 = vperm.xlu0 %290, %v229
      %v292 = vpop.permute.xlu0 %291
      %294 = vset.pattern.permute.xlu0 1
      %295 = vperm.xlu0 %294, %v230
      %v296 = vpop.permute.xlu0 %295
      %298 = vset.pattern.permute.xlu0 1
      %299 = vperm.xlu0 %298, %v231
      %v300 = vpop.permute.xlu0 %299
      %302 = vset.pattern.permute.xlu0 1
      %303 = vperm.xlu0 %302, %v232
      %v304 = vpop.permute.xlu0 %303
      %306 = vset.pattern.permute.xlu0 1
      %307 = vperm.xlu0 %306, %v233
      %v308 = vpop.permute.xlu0 %307
      %310 = vset.pattern.permute.xlu0 1
      %311 = vperm.xlu0 %310, %v234
      %v312 = vpop.permute.xlu0 %311
      %314 = vset.pattern.permute.xlu0 1
      %315 = vperm.xlu0 %314, %v235
      %v316 = vpop.permute.xlu0 %315
      %318 = vset.pattern.permute.xlu0 1
      %319 = vperm.xlu0 %318, %v236
      %v320 = vpop.permute.xlu0 %319
      %v322 = vlaneseq
      %v323 = vshrl.u32 %v322, 7
      %v324 = vsub.s32 1, %v323
      %v325 = vrot.slane %v237, %v324
      %v326 = vmul.f32 %v292, %v325
      %v327 = vmul.f32 %v296, %v325
      %v328 = vmul.f32 %v300, %v325
      %v329 = vmul.f32 %v304, %v325
      %v330 = vmul.f32 %v308, %v325
      %v331 = vmul.f32 %v312, %v325
      %v332 = vmul.f32 %v316, %v325
      %v333 = vmul.f32 %v320, %v325
      %v334 = vadd.f32 %v282, %v326
      %v335 = vadd.f32 %v283, %v327
      %v336 = vadd.f32 %v284, %v328
      %v337 = vadd.f32 %v285, %v329
      %v338 = vadd.f32 %v286, %v330
      %v339 = vadd.f32 %v287, %v331
      %v340 = vadd.f32 %v288, %v332
      %v341 = vadd.f32 %v289, %v333
      %v342 = vld [vmem:[%s2] sm:$0x1]
      %v344 = vlaneseq
      %v345 = vshrl.u32 %v344, 7
      %v346 = vsub.s32 0, %v345
      %v347 = vrot.slane %v342, %v346
      %v349 = vadd.f32 %v334, %v347
      %v350 = vadd.f32 %v335, %v347
      %v351 = vadd.f32 %v336, %v347
      %v352 = vadd.f32 %v337, %v347
      %v353 = vadd.f32 %v338, %v347
      %v354 = vadd.f32 %v339, %v347
      %v355 = vadd.f32 %v340, %v347
      %v356 = vadd.f32 %v341, %v347
      %v357 = vmax.f32 %v349, 0.0
      %v358 = vmax.f32 %v350, 0.0
      %v359 = vmax.f32 %v351, 0.0
      %v360 = vmax.f32 %v352, 0.0
      %v361 = vmax.f32 %v353, 0.0
      %v362 = vmax.f32 %v354, 0.0
      %v363 = vmax.f32 %v355, 0.0
      %v364 = vmax.f32 %v356, 0.0
      %v365 = vpack.c.bf16 %v358, %v357
      %v366 = vpack.c.bf16 %v360, %v359
      %v367 = vpack.c.bf16 %v362, %v361
      %v368 = vpack.c.bf16 %v364, %v363
      %v369 = vld [vmem:[%s3] sm:$0xf]
      %v370 = vld [vmem:[%s3 + $0x4] sm:$0xf]
      %v371 = vld [vmem:[%s3 + $0x8] sm:$0xf]
      %v372 = vld [vmem:[%s3 + $0xc] sm:$0xf]
      %v373 = vld [vmem:[%s3 + $0x10] sm:$0xf]
      %v374 = vld [vmem:[%s3 + $0x14] sm:$0xf]
      %v375 = vld [vmem:[%s3 + $0x18] sm:$0xf]
      %v376 = vld [vmem:[%s3 + $0x1c] sm:$0xf]
      %v377 = vld [vmem:[%s3 + $0x20] sm:$0xf]
      %v378 = vld [vmem:[%s3 + $0x24] sm:$0xf]
      %v379 = vld [vmem:[%s3 + $0x28] sm:$0xf]
      %v380 = vld [vmem:[%s3 + $0x2c] sm:$0xf]
      %v381 = vld [vmem:[%s3 + $0x30] sm:$0xf]
      %v382 = vld [vmem:[%s3 + $0x34] sm:$0xf]
      %v383 = vld [vmem:[%s3 + $0x38] sm:$0xf]
      %v384 = vld [vmem:[%s3 + $0x3c] sm:$0xf]
      %v385 = vld [vmem:[%s4] sm:$0x1]
      %v387 = vlaneseq
      %v388 = vshrl.u32 %v387, 7
      %v389 = vsub.s32 0, %v388
      %v390 = vrot.slane %v385, %v389
      %v408 = vunpack.c.l.b16 %v369
      %v409 = vunpack.c.l.b16 %v370
      %v410 = vunpack.c.l.b16 %v371
      %v411 = vunpack.c.l.b16 %v372
      %v412 = vunpack.c.l.b16 %v373
      %v413 = vunpack.c.l.b16 %v374
      %v414 = vunpack.c.l.b16 %v375
      %v415 = vunpack.c.l.b16 %v376
      %v416 = vunpack.c.l.b16 %v377
      %v417 = vunpack.c.l.b16 %v378
      %v418 = vunpack.c.l.b16 %v379
      %v419 = vunpack.c.l.b16 %v380
      %v420 = vunpack.c.l.b16 %v381
      %v421 = vunpack.c.l.b16 %v382
      %v422 = vunpack.c.l.b16 %v383
      %v423 = vunpack.c.l.b16 %v384
      %v424 = vpack.c.b16 %v409, %v408
      %v425 = vpack.c.b16 %v411, %v410
      %v426 = vpack.c.b16 %v413, %v412
      %v427 = vpack.c.b16 %v415, %v414
      %v428 = vpack.c.b16 %v417, %v416
      %v429 = vpack.c.b16 %v419, %v418
      %v430 = vpack.c.b16 %v421, %v420
      %v431 = vpack.c.b16 %v423, %v422
      %440 = vmatprep.subr.bf16.mxu0 0
      %441 = vmatpush1.bf16.msra.mxu0 %v431
      %442 = vmatprep.subr.bf16.mxu0 0
      %443 = vmatpush1.bf16.msra.mxu0 %v430
      %444 = vmatprep.subr.bf16.mxu0 0
      %445 = vmatpush1.bf16.msra.mxu0 %v429
      %446 = vmatprep.subr.bf16.mxu0 0
      %447 = vmatpush1.bf16.msra.mxu0 %v428
      %448 = vmatprep.subr.bf16.mxu0 0
      %449 = vmatpush1.bf16.msra.mxu0 %v427
      %450 = vmatprep.subr.bf16.mxu0 0
      %451 = vmatpush1.bf16.msra.mxu0 %v426
      %452 = vmatprep.subr.bf16.mxu0 0
      %453 = vmatpush1.bf16.msra.mxu0 %v425
      %454 = vmatprep.subr.bf16.mxu0 0
      %455 = vmatpush1.bf16.msra.mxu0 %v424
      %456 = vmatprep.subr.bf16.mxu0 0
      %457 = vmatpush2.bf16.msra.mxu0 0
      %458 = vmatprep.subr.bf16.mxu0 0
      %459 = vmatpush2.bf16.msra.mxu0 0
      %460 = vmatprep.subr.bf16.mxu0 0
      %461 = vmatpush2.bf16.msra.mxu0 0
      %462 = vmatprep.subr.bf16.mxu0 0
      %463 = vmatpush2.bf16.msra.mxu0 0
      %464 = vmatprep.subr.bf16.mxu0 0
      %465 = vmatpush2.bf16.msra.mxu0 0
      %466 = vmatprep.subr.bf16.mxu0 0
      %467 = vmatpush2.bf16.msra.mxu0 0
      %468 = vmatprep.subr.bf16.mxu0 0
      %469 = vmatpush2.bf16.msra.mxu0 0
      %470 = vmatprep.subr.bf16.mxu0 0
      %471 = vmatpush2.bf16.msra.mxu0 0
      %472 = vmatprep.mubr.bf16.mxu0 0
      %473 = vmatmul.mubr.bf16.gmra.mxu0 %v365
      %v474 = vpop.f32.mrf.mxu0
      %v475 = vadd.f32 %v390, %v474
      %v476 = vpop.f32.mrf.mxu0
      %v477 = vpop.f32.mrf.mxu0
      %v478 = vadd.f32 %v390, %v477
      %v479 = vpop.f32.mrf.mxu0
      %480 = vmatprep.mubr.bf16.mxu0 0
      %481 = vmatmul.mubr.bf16.gmra.mxu0 %v366
      %v482 = vpop.f32.mrf.mxu0
      %v483 = vadd.f32 %v390, %v482
      %v484 = vpop.f32.mrf.mxu0
      %v485 = vpop.f32.mrf.mxu0
      %v486 = vadd.f32 %v390, %v485
      %v487 = vpop.f32.mrf.mxu0
      %488 = vmatprep.mubr.bf16.mxu0 0
      %489 = vmatmul.mubr.bf16.gmra.mxu0 %v367
      %v490 = vpop.f32.mrf.mxu0
      %v491 = vadd.f32 %v390, %v490
      %v492 = vpop.f32.mrf.mxu0
      %v493 = vpop.f32.mrf.mxu0
      %v494 = vadd.f32 %v390, %v493
      %v495 = vpop.f32.mrf.mxu0
      %496 = vmatprep.mubr.bf16.mxu0 0
      %497 = vmatmul.mubr.bf16.gmra.mxu0 %v368
      %v498 = vpop.f32.mrf.mxu0
      %v499 = vadd.f32 %v390, %v498
      %v500 = vpop.f32.mrf.mxu0
      %v501 = vpop.f32.mrf.mxu0
      %v502 = vadd.f32 %v390, %v501
      %v503 = vpop.f32.mrf.mxu0
      %504 = vdwg.mxu0
      %505 = vst [vmem:[%s226] sm:$0xff] %v475
      %506 = vst [vmem:[%s226 + $0x8] sm:$0xff] %v478
      %507 = vst [vmem:[%s226 + $0x10] sm:$0xff] %v483
      %508 = vst [vmem:[%s226 + $0x18] sm:$0xff] %v486
      %509 = vst [vmem:[%s226 + $0x20] sm:$0xff] %v491
      %510 = vst [vmem:[%s226 + $0x28] sm:$0xff] %v494
      %511 = vst [vmem:[%s226 + $0x30] sm:$0xff] %v499
      %512 = vst [vmem:[%s226 + $0x38] sm:$0xff] %v502
      %s513 = smul.u32 8, %s16
      %p514 = scmp.lt.s32.totalorder %s513, 15
      %s515 = scalar_select %p514, %s513, 15
      %s516 = smul.addr %s515, 8
      %s517 = scalar_lea.vmem %s5, %s516
      // Predicated region
      $region41: #{net_forward.1} parent=39 // pred_check
        %p518 = pneg %p144
      $region42: #{net_forward.1} parent=39 // pred_check_branch
        %520 = sbr.rel (%p518) target = $region44
      $region43: #{net_forward.1} parent=39 // pred_region
        %s521 = smul.u32 8, %s16
      $region44: #{net_forward.1} parent=39 // pred_fallthru
        _
    $region40: #{net_forward.1} parent=5 // pred_fallthru
      _
    %p522 = scmp.le.s32.totalorder 2, %s11
    // Predicated region
    $region45: #{net_forward.1} parent=5 // pred_check
      %p523 = pneg %p522
    $region46: #{net_forward.1} parent=5 // pred_check_branch
      %525 = sbr.rel (%p523) target = $region48
    $region47: #{net_forward.1} parent=5 // pred_region
      %s526 = ssub.s32 %s11, 2
      // Predicated region
      $region49: #{net_forward.1} parent=47 // pred_check
        %p527 = pneg %p150
      $region50: #{net_forward.1} parent=47 // pred_check_branch
        %529 = sbr.rel (%p527) target = $region52
      $region51: #{net_forward.1} parent=47 // pred_region
        %s530 = smul.u32 8, %s17
        %p531 = scmp.lt.s32.totalorder %s530, 15
        %s532 = scalar_select %p531, %s530, 15
        %s533 = smul.addr %s532, 8
        %s534 = scalar_lea.vmem %s5, %s533
      $region52: #{net_forward.1} parent=47 // pred_fallthru
        _
    $region48: #{net_forward.1} parent=5 // pred_fallthru
      _
  $region6: #{net_forward.1} parent=0 // loop_footer
    %s15 = sadd.s32 1, %s11
  $region7: #{net_forward.1} parent=0 // loop_footer_branch
    %10 = sbr.rel target = $region3
  $region8: #{net_forward.1} parent=0 // loop_exit
    _

</llo_original>
